<compile_context>
chip_gen: v5e
topology: v5e:2x2
jax: 0.10.0
libtpu: 0.0.40
codegen_flags: <defaults>
</compile_context>

<pallas_src>
import functools

import jax
import jax.numpy as jnp
from jax.experimental import pallas as pl
from jax.experimental.pallas import tpu as pltpu

_LANES = 128
_SUBLANES = 8
# ~4 MiB of each input per grid step: large enough that the ~0.35 us per-step
# overhead is negligible vs. HBM DMA on v5e/v6e/v7x, small enough that the
# double-buffered working set (~16 MiB) fits the 32 MiB limit we request.
_TARGET_BLOCK_BYTES = 4 * 1024 * 1024
_VMEM_LIMIT_BYTES = 32 * 1024 * 1024


def _sub_mult(dtype):
    # Sublane multiple for the input block shape: 8 for 4-byte, 16 for 2-byte,
    # 32 for 1-byte dtypes.
    return {4: 8, 2: 16, 1: 32}.get(jnp.dtype(dtype).itemsize, 8)


def _rmse_kernel(yhat_ref, y_ref, o_ref, *, block_rows, total_rows, n_blocks,
                 needs_mask):
    # Grid = (outer "parallel" megacore split, inner "arbitrary" reduction).
    i = pl.program_id(1)

    @pl.when(i == 0)
    def _init():
        o_ref[...] = jnp.zeros_like(o_ref)

    d = yhat_ref[...].astype(jnp.float32) - y_ref[...].astype(jnp.float32)
    d2 = d * d

    def _partial(x):
        # VPU-only partial reduction into an (8, 128) vreg-shaped slab.
        return jnp.sum(x.reshape(block_rows // _SUBLANES, _SUBLANES, _LANES),
                       axis=0)

    if needs_mask:
        # Unclamped global block index. The in_spec index_map clamps the DMA
        # source to n_blocks - 1, so a duplicated block from an odd megacore
        # split shows up here as gblk >= n_blocks and gets fully zeroed.
        gblk = pl.program_id(0) * pl.num_programs(1) + i
        is_body = gblk < (n_blocks - 1)

        @pl.when(is_body)
        def _hot():
            o_ref[0] += _partial(d2)

        @pl.when(jnp.logical_not(is_body))
        def _tail():
            # Only the tail / duplicated block pays for iota + cmp + select.
            # d2 is only consumed after the select, so garbage past the end of
            # the array (partial-block DMA overhang) never leaks through.
            row_ids = gblk * block_rows + jax.lax.broadcasted_iota(
                jnp.int32, (block_rows, _LANES), 0)
            o_ref[0] += _partial(jnp.where(row_ids < total_rows, d2, 0.0))
    else:
        o_ref[0] += _partial(d2)


def rmse_loss(yhat, y, *, target_block_bytes=_TARGET_BLOCK_BYTES):
    assert yhat.shape == y.shape, "yhat and y must have the same shape"
    n = yhat.size

    sub_mult = max(_sub_mult(yhat.dtype), _sub_mult(y.dtype))
    max_itemsize = max(jnp.dtype(yhat.dtype).itemsize,
                       jnp.dtype(y.dtype).itemsize)

    flat_yhat = jnp.ravel(yhat)
    flat_y = jnp.ravel(y)

    if n % _LANES != 0:
        # TODO(synk): lane-unaligned element counts still take a wrapper-side
        # jnp.pad (a full HBM copy of both inputs); a fully in-kernel ragged
        # tail needs a 1-D block path that risks expensive relayouts.
        pad = _LANES - (n % _LANES)
        flat_yhat = jnp.pad(flat_yhat, (0, pad))
        flat_y = jnp.pad(flat_y, (0, pad))
        rows = (n + pad) // _LANES
    else:
        rows = n // _LANES   # copy-free reshape path (common NCHW case)

    yhat2d = flat_yhat.reshape(rows, _LANES)
    y2d = flat_y.reshape(rows, _LANES)

    # Dtype-aware block sizing: ~target_block_bytes per input per grid step,
    # clamped to the array and kept a multiple of the sublane packing.
    block_rows = max(1, target_block_bytes // (_LANES * max_itemsize))
    block_rows = max(sub_mult, (min(block_rows, rows) // sub_mult) * sub_mult)

    n_blocks = pl.cdiv(rows, block_rows)
    # Megacore (v7x) split of the reduction range whenever there is more than
    # one block; odd n_blocks duplicates the last block on core 1 and the
    # duplicate is masked to zero in the kernel. Harmless on 1-TC chips.
    n_outer = 2 if n_blocks >= 2 else 1
    n_inner = pl.cdiv(n_blocks, n_outer)
    needs_mask = (n_blocks * block_rows != rows) or (n_outer * n_inner != n_blocks)

    kernel = functools.partial(
        _rmse_kernel,
        block_rows=block_rows,
        total_rows=rows,
        n_blocks=n_blocks,
        needs_mask=needs_mask,
    )

    def in_map(o, i):
        # Clamp so the duplicated block of an odd split never DMAs out of
        # bounds; the kernel zeroes its contribution via the row mask.
        return (jnp.minimum(o * n_inner + i, n_blocks - 1), 0)

    bytes_accessed = (
        rows * _LANES * jnp.dtype(yhat.dtype).itemsize
        + rows * _LANES * jnp.dtype(y.dtype).itemsize
        + n_outer * _SUBLANES * _LANES * 4)

    partials = pl.pallas_call(
        kernel,
        out_shape=jax.ShapeDtypeStruct((n_outer, _SUBLANES, _LANES),
                                       jnp.float32),
        grid_spec=pltpu.PrefetchScalarGridSpec(
            num_scalar_prefetch=0,
            grid=(n_outer, n_inner),
            in_specs=[
                pl.BlockSpec((block_rows, _LANES), in_map),
                pl.BlockSpec((block_rows, _LANES), in_map),
            ],
            out_specs=pl.BlockSpec((1, _SUBLANES, _LANES),
                                   lambda o, i: (o, 0, 0)),
        ),
        compiler_params=pltpu.CompilerParams(
            dimension_semantics=("parallel", "arbitrary"),
            vmem_limit_bytes=_VMEM_LIMIT_BYTES,
        ),
        cost_estimate=pl.CostEstimate(
            flops=3 * n, transcendentals=0, bytes_accessed=bytes_accessed),
    )(yhat2d, y2d)

    # Tiny final cross-lane reduce (n_outer*8*128 partials) + sqrt in XLA.
    # PyTorch returns a 0-d scalar tensor; we return a 0-d f32 array.
    return jnp.sqrt(jnp.sum(partials) / jnp.float32(n))


if __name__ == "__main__":
    key = jax.random.PRNGKey(0)
    k1, k2, k3, k4, k5, k6 = jax.random.split(key, 6)

    def ref_rmse(a, b):
        a32 = a.astype(jnp.float32)
        b32 = b.astype(jnp.float32)
        return jnp.sqrt(jnp.mean((a32 - b32) ** 2))

    # 1) Small NCHW regression output — lane-aligned, copy-free path.
    yhat = jax.random.normal(k1, (2, 4, 16, 16), dtype=jnp.float32)
    y = jax.random.normal(k2, (2, 4, 16, 16), dtype=jnp.float32)
    loss = rmse_loss(yhat, y)
    jax.block_until_ready(loss)
    assert jnp.allclose(loss, ref_rmse(yhat, y), rtol=1e-5, atol=1e-6), loss

    # 2) Exercises the megacore split + masked overhanging tail block
    #    (rows=13 with block_rows=8 -> 2 blocks, one partial).
    yhat2 = jax.random.normal(k3, (13, 128), dtype=jnp.float32)
    y2 = jax.random.normal(k4, (13, 128), dtype=jnp.float32)
    loss2 = rmse_loss(yhat2, y2, target_block_bytes=8 * _LANES * 4)
    jax.block_until_ready(loss2)
    assert jnp.allclose(loss2, ref_rmse(yhat2, y2), rtol=1e-5, atol=1e-6), loss2

    # 3) Lane-unaligned element count (small pad fallback path).
    yhat3 = jax.random.normal(k5, (3, 5, 7, 11), dtype=jnp.float32)
    y3 = jax.random.normal(k6, (3, 5, 7, 11), dtype=jnp.float32)
    loss3 = rmse_loss(yhat3, y3)
    jax.block_until_ready(loss3)
    assert jnp.allclose(loss3, ref_rmse(yhat3, y3), rtol=1e-5, atol=1e-6), loss3

    print("KERNEL_OK")
</pallas_src>

<mosaic_0001>
module attributes {stable_mosaic.version = 11 : i64} {
  func.func @_rmse_kernel(%arg0: i32, %arg1: i32, %arg2: memref<16x128xf32, #tpu.memory_space<vmem>>, %arg3: memref<16x128xf32, #tpu.memory_space<vmem>>, %arg4: memref<1x8x128xf32, #tpu.memory_space<vmem>>) attributes {dimension_semantics = [#tpu.dimension_semantics<parallel>, #tpu.dimension_semantics<arbitrary>], iteration_bounds = array<i64: 1, 1>, scalar_prefetch = 0 : i64, scratch_operands = 0 : i64, tpu.core_type = #tpu.core_type<tc>, window_params = [{transform_indices = @transform_0, window_bounds = array<i64: 16, 128>}, {transform_indices = @transform_1, window_bounds = array<i64: 16, 128>}, {transform_indices = @transform_2, window_bounds = array<i64: 1, 8, 128>}]} {
    %c0_i32 = arith.constant 0 : i32
    %0 = arith.cmpi eq, %arg1, %c0_i32 : i32
    %1 = arith.extui %0 : i1 to i32
    %c0_i32_0 = arith.constant 0 : i32
    %2 = arith.cmpi ne, %1, %c0_i32_0 : i32
    scf.if %2 {
      %cst_10 = arith.constant 0.000000e+00 : f32
      %15 = vector.broadcast %cst_10 : f32 to vector<1x8x128xf32>
      %c0_11 = arith.constant 0 : index
      %c0_12 = arith.constant 0 : index
      %c0_13 = arith.constant 0 : index
      %16 = vector.load %arg4[%c0_11, %c0_12, %c0_13] : memref<1x8x128xf32, #tpu.memory_space<vmem>>, vector<1x8x128xf32>
      tpu.vector_store %arg4[%c0_11, %c0_12, %c0_13], %15 {strides = array<i32>} : memref<1x8x128xf32, #tpu.memory_space<vmem>>, vector<1x8x128xf32>,
    } else {
    }
    %c0 = arith.constant 0 : index
    %c0_1 = arith.constant 0 : index
    %3 = vector.load %arg2[%c0, %c0_1] : memref<16x128xf32, #tpu.memory_space<vmem>>, vector<16x128xf32>
    %c0_2 = arith.constant 0 : index
    %c0_3 = arith.constant 0 : index
    %4 = vector.load %arg3[%c0_2, %c0_3] : memref<16x128xf32, #tpu.memory_space<vmem>>, vector<16x128xf32>
    %5 = arith.subf %3, %4 : vector<16x128xf32>
    %6 = arith.mulf %5, %5 : vector<16x128xf32>
    %c0_4 = arith.constant 0 : index
    %c0_5 = arith.constant 0 : index
    %c0_6 = arith.constant 0 : index
    %7 = vector.load %arg4[%c0_4, %c0_5, %c0_6] : memref<1x8x128xf32, #tpu.memory_space<vmem>>, vector<1x8x128xf32>
    %8 = vector.shape_cast %7 : vector<1x8x128xf32> to vector<8x128xf32>
    %9 = vector.shape_cast %6 : vector<16x128xf32> to vector<2x8x128xf32>
    %cst = arith.constant dense<0.000000e+00> : vector<8x128xf32>
    %10 = vector.multi_reduction <add>, %9, %cst [0] : vector<2x8x128xf32> to vector<8x128xf32>
    %11 = arith.addf %8, %10 : vector<8x128xf32>
    %c0_7 = arith.constant 0 : index
    %c0_8 = arith.constant 0 : index
    %c0_9 = arith.constant 0 : index
    %12 = vector.load %arg4[%c0_7, %c0_8, %c0_9] : memref<1x8x128xf32, #tpu.memory_space<vmem>>, vector<1x8x128xf32>
    %13 = vector.shape_cast %12 : vector<1x8x128xf32> to vector<8x128xf32>
    %14 = vector.shape_cast %11 : vector<8x128xf32> to vector<1x8x128xf32>
    tpu.vector_store %arg4[%c0_7, %c0_8, %c0_9], %14 {strides = array<i32>} : memref<1x8x128xf32, #tpu.memory_space<vmem>>, vector<1x8x128xf32>,
    return
  }
  func.func @transform_0(%arg0: i32, %arg1: i32) -> (i32, i32) {
    %c1_i32 = arith.constant 1 : i32
    %0 = arith.muli %arg0, %c1_i32 : i32
    %1 = arith.addi %0, %arg1 : i32
    %c0_i32 = arith.constant 0 : i32
    %2 = arith.minsi %1, %c0_i32 : i32
    %c0_i32_0 = arith.constant 0 : i32
    %c0_i32_1 = arith.constant 0 : i32
    return %2, %c0_i32_0 : i32, i32
  }
  func.func @transform_1(%arg0: i32, %arg1: i32) -> (i32, i32) {
    %c1_i32 = arith.constant 1 : i32
    %0 = arith.muli %arg0, %c1_i32 : i32
    %1 = arith.addi %0, %arg1 : i32
    %c0_i32 = arith.constant 0 : i32
    %2 = arith.minsi %1, %c0_i32 : i32
    %c0_i32_0 = arith.constant 0 : i32
    %c0_i32_1 = arith.constant 0 : i32
    return %2, %c0_i32_0 : i32, i32
  }
  func.func @transform_2(%arg0: i32, %arg1: i32) -> (i32, i32, i32) {
    %c0_i32 = arith.constant 0 : i32
    %c0_i32_0 = arith.constant 0 : i32
    %c0_i32_1 = arith.constant 0 : i32
    return %arg0, %c0_i32, %c0_i32_0 : i32, i32, i32
  }
}

</mosaic_0001>

<llo_original>
// kernel: tpu_custom_call.1
$region0: #{tpu_custom_call.1}
  #allocation0 [shape = 'u32[]', space=smem, size = 0x4, offset = 0x4, fixed_abs, tag = 'smem constant byte address 0x4 - core index']
  #allocation1 [shape = 'u32[72,128]{1,0:T(1,128)}', space=vmem, size = 0x9000, scoped, tag = 'internal scratch']
  %s0 = inlined_call_operand.hbm [shape: f32[16,128], index: 0, kind: input, shape index: {}]
  %s1 = inlined_call_operand.hbm [shape: f32[16,128], index: 1, kind: input, shape index: {}]
  %s2 = inlined_call_operand.hbm [shape: f32[1,8,128], index: 2, kind: output, shape index: {}]
  %s3 = sld [smem:[#allocation0]]
  $region30: #{tpu_custom_call.1} parent=0
    _
  %s5 = ssub.s32 1, %s3
  %s6 = scalar_select 0, %s5, %s3
  $region1: #{tpu_custom_call.1} parent=0
    #allocation2 [shape = 'u8[8192]{0}', space=vmem, size = 0x2000, scoped, tag = 'input window, operand 0, single buffered']
    #allocation3 [shape = 's32[1]{0}', space=sflag, size = 0x4, scoped, tag = 'scoped memory for tpu_custom_call.1']
    #allocation4 [shape = 's32[1]{0}', space=sflag, size = 0x4, scoped, tag = 'scoped memory for tpu_custom_call.1']
    #allocation5 [shape = 'u8[8192]{0}', space=vmem, size = 0x2000, scoped, tag = 'input window, operand 1, single buffered']
    #allocation6 [shape = 's32[1]{0}', space=sflag, size = 0x4, scoped, tag = 'scoped memory for tpu_custom_call.1']
    #allocation7 [shape = 'u8[4096]{0}', space=vmem, size = 0x1000, scoped, tag = 'output window, operand 0, single buffered']
    %7 = vsyncpa [#allocation3], 0
    %8 = vsyncpa [#allocation6], 0
    %9 = vsyncpa [#allocation4], 0
    // Predicated region
    $region2: #{tpu_custom_call.1} parent=1 // pred_check
      _
    $region3: #{tpu_custom_call.1} parent=1 // pred_check_branch
      %11 = sbr.rel (0) target = $region5
    $region4: #{tpu_custom_call.1} parent=1 // pred_region
      %s12 = sadd.s32 0, 0
      %p13 = scmp.lt.s32.totalorder %s12, 0
      %s14 = scalar_select %p13, %s12, 0
      %s15 = smul.u32 2, %s14
      %17 = vsyncadd [#allocation3], 0
      %s18 = smul.addr %s15, 8
      %s19 = scalar_lea.hbm %s0, %s18
      %s20 = sshll.u32 %s19, 4
      %s21 = int_to_ptr.hbm [resolvable:$true] %s20
      %s22 = sshll.u32 [#allocation2], 4
      %s23 = int_to_ptr.vmem [resolvable:$true] %s22
      %28 = dma.hbm_to_vmem [thread:$0]  %s21, 256, %s23, [#allocation3], 128, 128, 8
    $region5: #{tpu_custom_call.1} parent=1 // pred_fallthru
      _
    // Predicated region
    $region6: #{tpu_custom_call.1} parent=1 // pred_check
      _
    $region7: #{tpu_custom_call.1} parent=1 // pred_check_branch
      %30 = sbr.rel (0) target = $region9
    $region8: #{tpu_custom_call.1} parent=1 // pred_region
      %s31 = sadd.s32 0, 0
      %p32 = scmp.lt.s32.totalorder %s31, 0
      %s33 = scalar_select %p32, %s31, 0
      %s34 = smul.u32 2, %s33
      %36 = vsyncadd [#allocation6], 0
      %s37 = smul.addr %s34, 8
      %s38 = scalar_lea.hbm %s1, %s37
      %s39 = sshll.u32 %s38, 4
      %s40 = int_to_ptr.hbm [resolvable:$true] %s39
      %s41 = sshll.u32 [#allocation5], 4
      %s42 = int_to_ptr.vmem [resolvable:$true] %s41
      %47 = dma.hbm_to_vmem [thread:$0]  %s40, 256, %s42, [#allocation6], 128, 128, 8
    $region9: #{tpu_custom_call.1} parent=1 // pred_fallthru
      _
    // Predicated region
    $region10: #{tpu_custom_call.1} parent=1 // pred_check
      _
    $region11: #{tpu_custom_call.1} parent=1 // pred_check_branch
      %49 = sbr.rel (0) target = $region13
    $region12: #{tpu_custom_call.1} parent=1 // pred_region
      %51 = dma.done [#allocation3], 256
    $region13: #{tpu_custom_call.1} parent=1 // pred_fallthru
      _
    // Predicated region
    $region14: #{tpu_custom_call.1} parent=1 // pred_check
      _
    $region15: #{tpu_custom_call.1} parent=1 // pred_check_branch
      %53 = sbr.rel (0) target = $region17
    $region16: #{tpu_custom_call.1} parent=1 // pred_region
      %55 = dma.done [#allocation6], 256
    $region17: #{tpu_custom_call.1} parent=1 // pred_fallthru
      _
    %s56 = sadd.s32 0, 0
    %p57 = scmp.lt.s32.totalorder %s56, 0
    %s58 = scalar_select %p57, %s56, 0
    %s59 = smul.u32 2, %s58
    %s60 = sadd.s32 0, 0
    %p61 = scmp.lt.s32.totalorder %s60, 0
    %s62 = scalar_select %p61, %s60, 0
    %s63 = smul.u32 2, %s62
    %p64 = scmp.eq.s32.totalorder 0, 0
    // Predicated region
    $region18: #{tpu_custom_call.1} parent=1 // pred_check
      %p65 = pneg %p64
    $region19: #{tpu_custom_call.1} parent=1 // pred_check_branch
      %67 = sbr.rel (%p65) target = $region21
    $region20: #{tpu_custom_call.1} parent=1 // pred_region
      %68 = vst [vmem:[#allocation7] sm:$0xff] 0.0
    $region21: #{tpu_custom_call.1} parent=1 // pred_fallthru
      _
    %v69 = vld [vmem:[#allocation2] sm:$0xff]
    %v70 = vld [vmem:[#allocation2 + $0x8] sm:$0xff]
    %v71 = vld [vmem:[#allocation5] sm:$0xff]
    %v72 = vld [vmem:[#allocation5 + $0x8] sm:$0xff]
    %v73 = vsub.f32 %v69, %v71
    %v74 = vsub.f32 %v70, %v72
    %v75 = vmul.f32 %v73, %v73
    %v76 = vmul.f32 %v74, %v74
    %v77 = vld [vmem:[#allocation7] sm:$0xff]
    %v78 = vadd.f32 %v75, %v76
    %v79 = vadd.f32 %v77, %v78
    %80 = vst [vmem:[#allocation7] sm:$0xff] %v79
    // Predicated region
    $region22: #{tpu_custom_call.1} parent=1 // pred_check
      _
    $region23: #{tpu_custom_call.1} parent=1 // pred_check_branch
      %82 = sbr.rel (0) target = $region25
    $region24: #{tpu_custom_call.1} parent=1 // pred_region
      %84 = vsyncadd [#allocation4], 0
      %s86 = sshll.u32 [#allocation7], 4
      %s87 = int_to_ptr.vmem [resolvable:$true] %s86
      %s88 = sshll.u32 %s2, 4
      %s89 = int_to_ptr.hbm [resolvable:$true] %s88
      %91 = dma.vmem_to_hbm [thread:$0]  %s87, 128, %s89, [#allocation4]
    $region25: #{tpu_custom_call.1} parent=1 // pred_fallthru
      _
    // Predicated region
    $region26: #{tpu_custom_call.1} parent=1 // pred_check
      _
    $region27: #{tpu_custom_call.1} parent=1 // pred_check_branch
      %93 = sbr.rel (0) target = $region29
    $region28: #{tpu_custom_call.1} parent=1 // pred_region
      %95 = dma.done [#allocation4], 128
    $region29: #{tpu_custom_call.1} parent=1 // pred_fallthru
      _
    %96 = vsyncpa [#allocation3], 1
    %97 = vsyncpa [#allocation6], 1
    %98 = vsyncpa [#allocation4], 1

</llo_original>
